<compile_context>
chip_gen: v5e
topology: v5e:2x2
jax: 0.10.0
libtpu: 0.0.40
codegen_flags: <defaults>
</compile_context>

<pallas_src>
import functools

import jax
import jax.numpy as jnp
from jax.experimental import pallas as pl
from jax.experimental.pallas import tpu as pltpu

NEG_SLOPE = 0.01      # nn.LeakyReLU default negative_slope
LANE = 128            # lane width; hidden/out dims padded to multiples of this
SUBLANE_BF16 = 16     # bf16 packs 16 sublanes per vreg -> batch tile multiple


def _leaky_relu(x):
    # max(x, a*x) == LeakyReLU(x) for 0 < a < 1; cheaper than where(cmp, ...).
    return jnp.maximum(x, NEG_SLOPE * x)


def _round_up(n, m):
    return (n + m - 1) // m * m


def _vmem_capacity_bytes():
    try:
        return int(pltpu.get_tpu_info().vmem_capacity_bytes)
    except Exception:
        return 64 * 1024 * 1024  # conservative default (v7x per-TC VMEM)


def mlp_kernel(x_ref, w1_ref, b1_ref, w2_ref, b2_ref, w3_ref, b3_ref, o_ref):
    # x / weights are bf16; all accumulation, bias adds, residuals and the
    # LeakyReLU epilogue happen in f32.
    x = x_ref[...]

    h1 = jnp.dot(x, w1_ref[...], preferred_element_type=jnp.float32) + b1_ref[...]
    h1 = _leaky_relu(h1)

    h2 = jnp.dot(h1.astype(jnp.bfloat16), w2_ref[...],
                 preferred_element_type=jnp.float32) + b2_ref[...]
    h2 = _leaky_relu(h2 + h1)

    h3 = jnp.dot(h2.astype(jnp.bfloat16), w3_ref[...],
                 preferred_element_type=jnp.float32) + b3_ref[...]
    o_ref[...] = _leaky_relu(h3 + h2).astype(o_ref.dtype)


def mlp_forward(x, params, *, tm=None, out_dtype=jnp.float32):
    """x: [batch, in_feature] float32 (or bf16). params: dict of weights/biases."""
    w1, b1, w2, b2, w3, b3 = (
        params["w1"], params["b1"], params["w2"],
        params["b2"], params["w3"], params["b3"],
    )
    batch, in_feature = x.shape
    hidden = w1.shape[1]
    out_feature = w3.shape[1]
    assert w1.shape == (in_feature, hidden)
    assert w2.shape == (hidden, hidden)
    # The residual in fc3's add only type-checks when out == hidden.
    assert out_feature == hidden, "MLP requires out_feature == hidden_unit"

    # ---- Lane-dense geometry for hidden/out (weights resident, cheap to pad)
    h_p = _round_up(hidden, LANE)
    out_p = _round_up(out_feature, LANE)   # == h_p since out_feature == hidden

    # ---- Batch tile: 16-aligned (bf16 sublane packing), capped at 1024.
    # For batch > 256 split into >= 2 tiles so both v7x TensorCores get work.
    if tm is None:
        tm_cap = 1024
        if batch > 256:
            tm = min(_round_up(-(-batch // 2), SUBLANE_BF16), tm_cap)
        else:
            tm = min(_round_up(batch, SUBLANE_BF16), tm_cap)
    batch_p = _round_up(batch, tm)
    grid = (batch_p // tm,)

    def pad2(a, rows, cols):
        pr, pc = rows - a.shape[0], cols - a.shape[1]
        if pr == 0 and pc == 0:
            return a
        return jnp.pad(a, ((0, pr), (0, pc)))

    # Zero padding keeps padded hidden/out lanes exactly zero through every
    # layer (zero weight cols/rows + zero bias + LeakyReLU(0) == 0), so the
    # residual adds never pick up garbage; results sliced back afterwards.
    # x's feature dim is left unpadded (block dim == full array dim is exempt
    # from the 128-lane rule) to avoid an extra pad pass / extra K traffic.
    xp = pad2(x, batch_p, in_feature)
    if xp.dtype != jnp.bfloat16:
        xp = xp.astype(jnp.bfloat16)
    w1p = pad2(w1, in_feature, h_p).astype(jnp.bfloat16)
    w2p = pad2(w2, h_p, h_p).astype(jnp.bfloat16)
    w3p = pad2(w3, h_p, out_p).astype(jnp.bfloat16)
    b1p = pad2(b1, 1, h_p).astype(jnp.float32)
    b2p = pad2(b2, 1, h_p).astype(jnp.float32)
    b3p = pad2(b3, 1, out_p).astype(jnp.float32)

    out_bytes = jnp.dtype(out_dtype).itemsize
    weight_bytes = ((w1p.size + w2p.size + w3p.size) * 2
                    + (b1p.size + b2p.size + b3p.size) * 4)

    # ---- Cost estimate ------------------------------------------------------
    flops = 2 * batch_p * (in_feature * h_p + h_p * h_p + h_p * out_p)
    bytes_accessed = (xp.size * 2 + weight_bytes + batch_p * out_p * out_bytes)

    # Weights/biases: constant index_map -> loaded once, VMEM-resident.
    def resident(a, single_buffer):
        kwargs = {"pipeline_mode": pl.Buffered(1)} if single_buffer else {}
        return pl.BlockSpec(a.shape, lambda i: (0,) * a.ndim, **kwargs)

    def run(single_buffer_weights):
        weight_bufs = 1 if single_buffer_weights else 2
        vmem_needed = (
            2 * tm * in_feature * 2        # double-buffered x tiles (bf16)
            + 2 * tm * out_p * out_bytes   # double-buffered out tiles
            + weight_bufs * weight_bytes   # resident weights/biases
            + 4 * tm * h_p * 4             # live f32 activations in the body
        )
        # Generation-aware VMEM limit: ~1.25x the need, capped at 85% of the
        # chip's per-core VMEM (64 MiB on v7x, 128 MiB on v5e/v6e).
        cap = _vmem_capacity_bytes()
        vmem_limit = max(int(1.25 * vmem_needed), 4 * 1024 * 1024)
        vmem_limit = min(vmem_limit, int(0.85 * cap))

        return pl.pallas_call(
            mlp_kernel,
            out_shape=jax.ShapeDtypeStruct((batch_p, out_p), out_dtype),
            grid=grid,
            in_specs=[
                pl.BlockSpec((tm, in_feature), lambda i: (i, 0)),  # x: batch-tiled
                resident(w1p, single_buffer_weights),
                resident(b1p, single_buffer_weights),
                resident(w2p, single_buffer_weights),
                resident(b2p, single_buffer_weights),
                resident(w3p, single_buffer_weights),
                resident(b3p, single_buffer_weights),
            ],
            out_specs=pl.BlockSpec((tm, out_p), lambda i: (i, 0)),
            compiler_params=pltpu.CompilerParams(
                dimension_semantics=("parallel",),
                vmem_limit_bytes=int(vmem_limit),
            ),
            cost_estimate=pl.CostEstimate(
                flops=int(flops), transcendentals=0,
                bytes_accessed=int(bytes_accessed)),
        )(xp, w1p, b1p, w2p, b2p, w3p, b3p)

    try:
        out_padded = run(single_buffer_weights=True)
    except Exception:
        # Fallback if this jax build rejects Buffered(1) on resident inputs.
        out_padded = run(single_buffer_weights=False)

    if batch_p != batch or out_p != out_feature:
        out_padded = out_padded[:batch, :out_feature]
    return out_padded


def init_params(key, in_feature, hidden_unit, out_feature):
    """Deterministic init mimicking nn.Linear's U(-1/sqrt(fan_in), 1/sqrt(fan_in))."""
    ks = jax.random.split(key, 6)

    def linear(kw, kb, fan_in, fan_out):
        bound = 1.0 / jnp.sqrt(fan_in)
        w = jax.random.uniform(kw, (fan_in, fan_out), jnp.float32, -bound, bound)
        b = jax.random.uniform(kb, (1, fan_out), jnp.float32, -bound, bound)
        return w, b

    w1, b1 = linear(ks[0], ks[1], in_feature, hidden_unit)
    w2, b2 = linear(ks[2], ks[3], hidden_unit, hidden_unit)
    w3, b3 = linear(ks[4], ks[5], hidden_unit, out_feature)
    return {"w1": w1, "b1": b1, "w2": w2, "b2": b2, "w3": w3, "b3": b3}


def reference_forward_f32(x, p):
    """Pure f32 reference (exact PyTorch semantics)."""
    h1 = _leaky_relu(x @ p["w1"] + p["b1"])
    h2 = _leaky_relu(h1 @ p["w2"] + p["b2"] + h1)
    h3 = _leaky_relu(h2 @ p["w3"] + p["b3"] + h2)
    return h3


def reference_forward_bf16(x, p):
    """Reference mirroring the kernel's bf16-input / f32-accumulate matmuls."""
    bf = jnp.bfloat16
    dot = functools.partial(jnp.dot, preferred_element_type=jnp.float32)
    h1 = _leaky_relu(dot(x.astype(bf), p["w1"].astype(bf)) + p["b1"])
    h2 = _leaky_relu(dot(h1.astype(bf), p["w2"].astype(bf)) + p["b2"] + h1)
    h3 = _leaky_relu(dot(h2.astype(bf), p["w3"].astype(bf)) + p["b3"] + h2)
    return h3


if __name__ == "__main__":
    key = jax.random.PRNGKey(0)
    k_x, k_p = jax.random.split(key)

    batch, in_feature, hidden_unit = 8, 16, 32
    out_feature = hidden_unit  # required by the residual in fc3's add

    x = jax.random.normal(k_x, (batch, in_feature), jnp.float32)
    params = init_params(k_p, in_feature, hidden_unit, out_feature)

    out = mlp_forward(x, params)
    out = jax.block_until_ready(out)
    assert out.shape == (batch, out_feature)
    assert out.dtype == jnp.float32

    # Tight check vs a reference that mirrors the kernel's bf16/f32 arithmetic.
    ref_bf16 = reference_forward_bf16(x, params)
    assert jnp.allclose(out, ref_bf16, atol=1e-3, rtol=1e-3), \
        float(jnp.max(jnp.abs(out - ref_bf16)))

    # Loose sanity check vs the exact f32 module semantics (bf16 rounding only).
    ref_f32 = reference_forward_f32(x, params)
    assert jnp.allclose(out, ref_f32, atol=5e-2, rtol=5e-2), \
        float(jnp.max(jnp.abs(out - ref_f32)))

    print("KERNEL_OK")
</pallas_src>

<mosaic_0001>
module attributes {stable_mosaic.version = 11 : i64} {
  func.func @mlp_kernel(%arg0: i32, %arg1: memref<16x16xbf16, #tpu.memory_space<vmem>>, %arg2: memref<16x128xbf16, #tpu.memory_space<vmem>>, %arg3: memref<1x128xf32, #tpu.memory_space<vmem>>, %arg4: memref<128x128xbf16, #tpu.memory_space<vmem>>, %arg5: memref<1x128xf32, #tpu.memory_space<vmem>>, %arg6: memref<128x128xbf16, #tpu.memory_space<vmem>>, %arg7: memref<1x128xf32, #tpu.memory_space<vmem>>, %arg8: memref<16x128xf32, #tpu.memory_space<vmem>>) attributes {dimension_semantics = [#tpu.dimension_semantics<parallel>], iteration_bounds = array<i64: 1>, scalar_prefetch = 0 : i64, scratch_operands = 0 : i64, tpu.core_type = #tpu.core_type<tc>, window_params = [{transform_indices = @transform_0, window_bounds = array<i64: 16, 16>}, {pipeline_mode = #tpu.pipeline_mode<synchronous>, transform_indices = @transform_1, window_bounds = array<i64: 16, 128>}, {pipeline_mode = #tpu.pipeline_mode<synchronous>, transform_indices = @transform_2, window_bounds = array<i64: 1, 128>}, {pipeline_mode = #tpu.pipeline_mode<synchronous>, transform_indices = @transform_3, window_bounds = array<i64: 128, 128>}, {pipeline_mode = #tpu.pipeline_mode<synchronous>, transform_indices = @transform_4, window_bounds = array<i64: 1, 128>}, {pipeline_mode = #tpu.pipeline_mode<synchronous>, transform_indices = @transform_5, window_bounds = array<i64: 128, 128>}, {pipeline_mode = #tpu.pipeline_mode<synchronous>, transform_indices = @transform_6, window_bounds = array<i64: 1, 128>}, {transform_indices = @transform_7, window_bounds = array<i64: 16, 128>}]} {
    %c0 = arith.constant 0 : index
    %c0_0 = arith.constant 0 : index
    %0 = vector.load %arg1[%c0, %c0_0] : memref<16x16xbf16, #tpu.memory_space<vmem>>, vector<16x16xbf16>
    %c0_1 = arith.constant 0 : index
    %c0_2 = arith.constant 0 : index
    %1 = vector.load %arg2[%c0_1, %c0_2] : memref<16x128xbf16, #tpu.memory_space<vmem>>, vector<16x128xbf16>
    %cst = arith.constant dense<0.000000e+00> : vector<16x128xf32>
    %2 = tpu.matmul %0, %1, %cst {dimension_numbers = #tpu.dot_dimension_numbers<[1], [0], [0], [1], [0, 0, 1, 1], [], []>} : vector<16x16xbf16>, vector<16x128xbf16>, vector<16x128xf32> -> vector<16x128xf32>
    %c0_3 = arith.constant 0 : index
    %c0_4 = arith.constant 0 : index
    %3 = vector.load %arg3[%c0_3, %c0_4] : memref<1x128xf32, #tpu.memory_space<vmem>>, vector<1x128xf32>
    %4 = vector.broadcast %3 : vector<1x128xf32> to vector<16x128xf32>
    %5 = arith.addf %2, %4 : vector<16x128xf32>
    %cst_5 = arith.constant 0.00999999977 : f32
    %6 = vector.broadcast %cst_5 : f32 to vector<16x128xf32>
    %7 = arith.mulf %6, %5 : vector<16x128xf32>
    %8 = arith.maximumf %5, %7 : vector<16x128xf32>
    %9 = arith.truncf %8 : vector<16x128xf32> to vector<16x128xbf16>
    %c0_6 = arith.constant 0 : index
    %c0_7 = arith.constant 0 : index
    %10 = vector.load %arg4[%c0_6, %c0_7] : memref<128x128xbf16, #tpu.memory_space<vmem>>, vector<128x128xbf16>
    %cst_8 = arith.constant dense<0.000000e+00> : vector<16x128xf32>
    %11 = tpu.matmul %9, %10, %cst_8 {dimension_numbers = #tpu.dot_dimension_numbers<[1], [0], [0], [1], [0, 0, 1, 1], [], []>} : vector<16x128xbf16>, vector<128x128xbf16>, vector<16x128xf32> -> vector<16x128xf32>
    %c0_9 = arith.constant 0 : index
    %c0_10 = arith.constant 0 : index
    %12 = vector.load %arg5[%c0_9, %c0_10] : memref<1x128xf32, #tpu.memory_space<vmem>>, vector<1x128xf32>
    %13 = vector.broadcast %12 : vector<1x128xf32> to vector<16x128xf32>
    %14 = arith.addf %11, %13 : vector<16x128xf32>
    %15 = arith.addf %14, %8 : vector<16x128xf32>
    %cst_11 = arith.constant 0.00999999977 : f32
    %16 = vector.broadcast %cst_11 : f32 to vector<16x128xf32>
    %17 = arith.mulf %16, %15 : vector<16x128xf32>
    %18 = arith.maximumf %15, %17 : vector<16x128xf32>
    %19 = arith.truncf %18 : vector<16x128xf32> to vector<16x128xbf16>
    %c0_12 = arith.constant 0 : index
    %c0_13 = arith.constant 0 : index
    %20 = vector.load %arg6[%c0_12, %c0_13] : memref<128x128xbf16, #tpu.memory_space<vmem>>, vector<128x128xbf16>
    %cst_14 = arith.constant dense<0.000000e+00> : vector<16x128xf32>
    %21 = tpu.matmul %19, %20, %cst_14 {dimension_numbers = #tpu.dot_dimension_numbers<[1], [0], [0], [1], [0, 0, 1, 1], [], []>} : vector<16x128xbf16>, vector<128x128xbf16>, vector<16x128xf32> -> vector<16x128xf32>
    %c0_15 = arith.constant 0 : index
    %c0_16 = arith.constant 0 : index
    %22 = vector.load %arg7[%c0_15, %c0_16] : memref<1x128xf32, #tpu.memory_space<vmem>>, vector<1x128xf32>
    %23 = vector.broadcast %22 : vector<1x128xf32> to vector<16x128xf32>
    %24 = arith.addf %21, %23 : vector<16x128xf32>
    %25 = arith.addf %24, %18 : vector<16x128xf32>
    %cst_17 = arith.constant 0.00999999977 : f32
    %26 = vector.broadcast %cst_17 : f32 to vector<16x128xf32>
    %27 = arith.mulf %26, %25 : vector<16x128xf32>
    %28 = arith.maximumf %25, %27 : vector<16x128xf32>
    %c0_18 = arith.constant 0 : index
    %c0_19 = arith.constant 0 : index
    %29 = vector.load %arg8[%c0_18, %c0_19] : memref<16x128xf32, #tpu.memory_space<vmem>>, vector<16x128xf32>
    tpu.vector_store %arg8[%c0_18, %c0_19], %28 {strides = array<i32>} : memref<16x128xf32, #tpu.memory_space<vmem>>, vector<16x128xf32>,
    return
  }
  func.func @transform_0(%arg0: i32) -> (i32, i32) {
    %c0_i32 = arith.constant 0 : i32
    %c0_i32_0 = arith.constant 0 : i32
    return %arg0, %c0_i32 : i32, i32
  }
  func.func @transform_1(%arg0: i32) -> (i32, i32) {
    %c0_i32 = arith.constant 0 : i32
    %c0_i32_0 = arith.constant 0 : i32
    %c0_i32_1 = arith.constant 0 : i32
    return %c0_i32, %c0_i32_0 : i32, i32
  }
  func.func @transform_2(%arg0: i32) -> (i32, i32) {
    %c0_i32 = arith.constant 0 : i32
    %c0_i32_0 = arith.constant 0 : i32
    %c0_i32_1 = arith.constant 0 : i32
    return %c0_i32, %c0_i32_0 : i32, i32
  }
  func.func @transform_3(%arg0: i32) -> (i32, i32) {
    %c0_i32 = arith.constant 0 : i32
    %c0_i32_0 = arith.constant 0 : i32
    %c0_i32_1 = arith.constant 0 : i32
    return %c0_i32, %c0_i32_0 : i32, i32
  }
  func.func @transform_4(%arg0: i32) -> (i32, i32) {
    %c0_i32 = arith.constant 0 : i32
    %c0_i32_0 = arith.constant 0 : i32
    %c0_i32_1 = arith.constant 0 : i32
    return %c0_i32, %c0_i32_0 : i32, i32
  }
  func.func @transform_5(%arg0: i32) -> (i32, i32) {
    %c0_i32 = arith.constant 0 : i32
    %c0_i32_0 = arith.constant 0 : i32
    %c0_i32_1 = arith.constant 0 : i32
    return %c0_i32, %c0_i32_0 : i32, i32
  }
  func.func @transform_6(%arg0: i32) -> (i32, i32) {
    %c0_i32 = arith.constant 0 : i32
    %c0_i32_0 = arith.constant 0 : i32
    %c0_i32_1 = arith.constant 0 : i32
    return %c0_i32, %c0_i32_0 : i32, i32
  }
  func.func @transform_7(%arg0: i32) -> (i32, i32) {
    %c0_i32 = arith.constant 0 : i32
    %c0_i32_0 = arith.constant 0 : i32
    return %arg0, %c0_i32 : i32, i32
  }
}

module attributes {stable_mosaic.version = 11 : i64} {
  func.func @mlp_kernel(%arg0: i32, %arg1: memref<16x16xbf16, #tpu.memory_space<vmem>>, %arg2: memref<16x128xbf16, #tpu.memory_space<vmem>>, %arg3: memref<1x128xf32, #tpu.memory_space<vmem>>, %arg4: memref<128x128xbf16, #tpu.memory_space<vmem>>, %arg5: memref<1x128xf32, #tpu.memory_space<vmem>>, %arg6: memref<128x128xbf16, #tpu.memory_space<vmem>>, %arg7: memref<1x128xf32, #tpu.memory_space<vmem>>, %arg8: memref<16x128xf32, #tpu.memory_space<vmem>>) attributes {dimension_semantics = [#tpu.dimension_semantics<parallel>], iteration_bounds = array<i64: 1>, scalar_prefetch = 0 : i64, scratch_operands = 0 : i64, tpu.core_type = #tpu.core_type<tc>, window_params = [{transform_indices = @transform_0, window_bounds = array<i64: 16, 16>}, {pipeline_mode = #tpu.pipeline_mode<synchronous>, transform_indices = @transform_1, window_bounds = array<i64: 16, 128>}, {pipeline_mode = #tpu.pipeline_mode<synchronous>, transform_indices = @transform_2, window_bounds = array<i64: 1, 128>}, {pipeline_mode = #tpu.pipeline_mode<synchronous>, transform_indices = @transform_3, window_bounds = array<i64: 128, 128>}, {pipeline_mode = #tpu.pipeline_mode<synchronous>, transform_indices = @transform_4, window_bounds = array<i64: 1, 128>}, {pipeline_mode = #tpu.pipeline_mode<synchronous>, transform_indices = @transform_5, window_bounds = array<i64: 128, 128>}, {pipeline_mode = #tpu.pipeline_mode<synchronous>, transform_indices = @transform_6, window_bounds = array<i64: 1, 128>}, {transform_indices = @transform_7, window_bounds = array<i64: 16, 128>}]} {
    %c0 = arith.constant 0 : index
    %c0_0 = arith.constant 0 : index
    %0 = vector.load %arg1[%c0, %c0_0] : memref<16x16xbf16, #tpu.memory_space<vmem>>, vector<16x16xbf16>
    %c0_1 = arith.constant 0 : index
    %c0_2 = arith.constant 0 : index
    %1 = vector.load %arg2[%c0_1, %c0_2] : memref<16x128xbf16, #tpu.memory_space<vmem>>, vector<16x128xbf16>
    %cst = arith.constant dense<0.000000e+00> : vector<16x128xf32>
    %2 = tpu.matmul %0, %1, %cst {dimension_numbers = #tpu.dot_dimension_numbers<[1], [0], [0], [1], [0, 0, 1, 1], [], []>} : vector<16x16xbf16>, vector<16x128xbf16>, vector<16x128xf32> -> vector<16x128xf32>
    %c0_3 = arith.constant 0 : index
    %c0_4 = arith.constant 0 : index
    %3 = vector.load %arg3[%c0_3, %c0_4] : memref<1x128xf32, #tpu.memory_space<vmem>>, vector<1x128xf32>
    %4 = vector.broadcast %3 : vector<1x128xf32> to vector<16x128xf32>
    %5 = arith.addf %2, %4 : vector<16x128xf32>
    %cst_5 = arith.constant 0.00999999977 : f32
    %6 = vector.broadcast %cst_5 : f32 to vector<16x128xf32>
    %7 = arith.mulf %6, %5 : vector<16x128xf32>
    %8 = arith.maximumf %5, %7 : vector<16x128xf32>
    %9 = arith.truncf %8 : vector<16x128xf32> to vector<16x128xbf16>
    %c0_6 = arith.constant 0 : index
    %c0_7 = arith.constant 0 : index
    %10 = vector.load %arg4[%c0_6, %c0_7] : memref<128x128xbf16, #tpu.memory_space<vmem>>, vector<128x128xbf16>
    %cst_8 = arith.constant dense<0.000000e+00> : vector<16x128xf32>
    %11 = tpu.matmul %9, %10, %cst_8 {dimension_numbers = #tpu.dot_dimension_numbers<[1], [0], [0], [1], [0, 0, 1, 1], [], []>} : vector<16x128xbf16>, vector<128x128xbf16>, vector<16x128xf32> -> vector<16x128xf32>
    %c0_9 = arith.constant 0 : index
    %c0_10 = arith.constant 0 : index
    %12 = vector.load %arg5[%c0_9, %c0_10] : memref<1x128xf32, #tpu.memory_space<vmem>>, vector<1x128xf32>
    %13 = vector.broadcast %12 : vector<1x128xf32> to vector<16x128xf32>
    %14 = arith.addf %11, %13 : vector<16x128xf32>
    %15 = arith.addf %14, %8 : vector<16x128xf32>
    %cst_11 = arith.constant 0.00999999977 : f32
    %16 = vector.broadcast %cst_11 : f32 to vector<16x128xf32>
    %17 = arith.mulf %16, %15 : vector<16x128xf32>
    %18 = arith.maximumf %15, %17 : vector<16x128xf32>
    %19 = arith.truncf %18 : vector<16x128xf32> to vector<16x128xbf16>
    %c0_12 = arith.constant 0 : index
    %c0_13 = arith.constant 0 : index
    %20 = vector.load %arg6[%c0_12, %c0_13] : memref<128x128xbf16, #tpu.memory_space<vmem>>, vector<128x128xbf16>
    %cst_14 = arith.constant dense<0.000000e+00> : vector<16x128xf32>
    %21 = tpu.matmul %19, %20, %cst_14 {dimension_numbers = #tpu.dot_dimension_numbers<[1], [0], [0], [1], [0, 0, 1, 1], [], []>} : vector<16x128xbf16>, vector<128x128xbf16>, vector<16x128xf32> -> vector<16x128xf32>
    %c0_15 = arith.constant 0 : index
    %c0_16 = arith.constant 0 : index
    %22 = vector.load %arg7[%c0_15, %c0_16] : memref<1x128xf32, #tpu.memory_space<vmem>>, vector<1x128xf32>
    %23 = vector.broadcast %22 : vector<1x128xf32> to vector<16x128xf32>
    %24 = arith.addf %21, %23 : vector<16x128xf32>
    %25 = arith.addf %24, %18 : vector<16x128xf32>
    %cst_17 = arith.constant 0.00999999977 : f32
    %26 = vector.broadcast %cst_17 : f32 to vector<16x128xf32>
    %27 = arith.mulf %26, %25 : vector<16x128xf32>
    %28 = arith.maximumf %25, %27 : vector<16x128xf32>
    %c0_18 = arith.constant 0 : index
    %c0_19 = arith.constant 0 : index
    %29 = vector.load %arg8[%c0_18, %c0_19] : memref<16x128xf32, #tpu.memory_space<vmem>>, vector<16x128xf32>
    tpu.vector_store %arg8[%c0_18, %c0_19], %28 {strides = array<i32>} : memref<16x128xf32, #tpu.memory_space<vmem>>, vector<16x128xf32>,
    return
  }
  func.func @transform_0(%arg0: i32) -> (i32, i32) {
    %c0_i32 = arith.constant 0 : i32
    %c0_i32_0 = arith.constant 0 : i32
    return %arg0, %c0_i32 : i32, i32
  }
  func.func @transform_1(%arg0: i32) -> (i32, i32) {
    %c0_i32 = arith.constant 0 : i32
    %c0_i32_0 = arith.constant 0 : i32
    %c0_i32_1 = arith.constant 0 : i32
    return %c0_i32, %c0_i32_0 : i32, i32
  }
  func.func @transform_2(%arg0: i32) -> (i32, i32) {
    %c0_i32 = arith.constant 0 : i32
    %c0_i32_0 = arith.constant 0 : i32
    %c0_i32_1 = arith.constant 0 : i32
    return %c0_i32, %c0_i32_0 : i32, i32
  }
  func.func @transform_3(%arg0: i32) -> (i32, i32) {
    %c0_i32 = arith.constant 0 : i32
    %c0_i32_0 = arith.constant 0 : i32
    %c0_i32_1 = arith.constant 0 : i32
    return %c0_i32, %c0_i32_0 : i32, i32
  }
  func.func @transform_4(%arg0: i32) -> (i32, i32) {
    %c0_i32 = arith.constant 0 : i32
    %c0_i32_0 = arith.constant 0 : i32
    %c0_i32_1 = arith.constant 0 : i32
    return %c0_i32, %c0_i32_0 : i32, i32
  }
  func.func @transform_5(%arg0: i32) -> (i32, i32) {
    %c0_i32 = arith.constant 0 : i32
    %c0_i32_0 = arith.constant 0 : i32
    %c0_i32_1 = arith.constant 0 : i32
    return %c0_i32, %c0_i32_0 : i32, i32
  }
  func.func @transform_6(%arg0: i32) -> (i32, i32) {
    %c0_i32 = arith.constant 0 : i32
    %c0_i32_0 = arith.constant 0 : i32
    %c0_i32_1 = arith.constant 0 : i32
    return %c0_i32, %c0_i32_0 : i32, i32
  }
  func.func @transform_7(%arg0: i32) -> (i32, i32) {
    %c0_i32 = arith.constant 0 : i32
    %c0_i32_0 = arith.constant 0 : i32
    return %arg0, %c0_i32 : i32, i32
  }
}

</mosaic_0001>

<llo_original>
// kernel: tpu_custom_call.1
$region0: #{tpu_custom_call.1}
  #allocation0 [shape = 'u32[]', space=smem, size = 0x4, offset = 0x4, fixed_abs, tag = 'smem constant byte address 0x4 - core index']
  #allocation1 [shape = 'u32[72,128]{1,0:T(1,128)}', space=vmem, size = 0x9000, scoped, tag = 'internal scratch']
  %s0 = inlined_call_operand.hbm [shape: bf16[16,16], index: 0, kind: input, shape index: {}]
  %s1 = inlined_call_operand.hbm [shape: bf16[16,128], index: 1, kind: input, shape index: {}]
  %s2 = inlined_call_operand.vmem [shape: f32[1,128], index: 2, kind: input, shape index: {}]
  %s3 = inlined_call_operand.hbm [shape: bf16[128,128], index: 3, kind: input, shape index: {}]
  %s4 = inlined_call_operand.vmem [shape: f32[1,128], index: 4, kind: input, shape index: {}]
  %s5 = inlined_call_operand.hbm [shape: bf16[128,128], index: 5, kind: input, shape index: {}]
  %s6 = inlined_call_operand.vmem [shape: f32[1,128], index: 6, kind: input, shape index: {}]
  %s7 = inlined_call_operand.hbm [shape: f32[16,128], index: 7, kind: output, shape index: {}]
  %s8 = sld [smem:[#allocation0]]
  $region54: #{tpu_custom_call.1} parent=0
    _
  %s10 = ssub.s32 1, %s8
  %s11 = scalar_select 0, %s10, %s8
  $region1: #{tpu_custom_call.1} parent=0
    #allocation2 [shape = 'u8[4096]{0}', space=vmem, size = 0x1000, scoped, tag = 'input window, operand 0, single buffered']
    #allocation3 [shape = 's32[1]{0}', space=sflag, size = 0x4, scoped, tag = 'scoped memory for tpu_custom_call.1']
    #allocation4 [shape = 's32[1]{0}', space=sflag, size = 0x4, scoped, tag = 'scoped memory for tpu_custom_call.1']
    #allocation5 [shape = 'u8[4096]{0}', space=vmem, size = 0x1000, scoped, tag = 'input window, operand 1, single buffered']
    #allocation6 [shape = 's32[1]{0}', space=sflag, size = 0x4, scoped, tag = 'scoped memory for tpu_custom_call.1']
    #allocation7 [shape = 'u8[32768]{0}', space=vmem, size = 0x8000, scoped, tag = 'input window, operand 3, single buffered']
    #allocation8 [shape = 'u8[32768]{0}', space=vmem, size = 0x8000, scoped, tag = 'input window, operand 5, single buffered']
    #allocation9 [shape = 's32[1]{0}', space=sflag, size = 0x4, scoped, tag = 'scoped memory for tpu_custom_call.1']
    #allocation10 [shape = 'u8[8192]{0}', space=vmem, size = 0x2000, scoped, tag = 'output window, operand 0, single buffered']
    %12 = vsyncpa [#allocation3], 0
    %13 = vsyncpa [#allocation6], 0
    %14 = vsyncpa [#allocation9], 0
    %15 = vsyncpa [#allocation4], 0
    // Predicated region
    $region2: #{tpu_custom_call.1} parent=1 // pred_check
      _
    $region3: #{tpu_custom_call.1} parent=1 // pred_check_branch
      %17 = sbr.rel (0) target = $region5
    $region4: #{tpu_custom_call.1} parent=1 // pred_region
      %19 = vsyncadd [#allocation3], 0
      %s20 = sshll.u32 %s0, 4
      %s21 = int_to_ptr.hbm [resolvable:$true] %s20
      %s22 = sshll.u32 [#allocation2], 4
      %s23 = int_to_ptr.vmem [resolvable:$true] %s22
      %28 = dma.hbm_to_vmem [thread:$0]  %s21, 128, %s23, [#allocation3], 64, 64, 4
    $region5: #{tpu_custom_call.1} parent=1 // pred_fallthru
      _
    // Predicated region
    $region6: #{tpu_custom_call.1} parent=1 // pred_check
      _
    $region7: #{tpu_custom_call.1} parent=1 // pred_check_branch
      %30 = sbr.rel (0) target = $region9
    $region8: #{tpu_custom_call.1} parent=1 // pred_region
      %32 = vsyncadd [#allocation6], 0
      %s33 = sshll.u32 %s1, 4
      %s34 = int_to_ptr.hbm [resolvable:$true] %s33
      %s35 = sshll.u32 [#allocation5], 4
      %s36 = int_to_ptr.vmem [resolvable:$true] %s35
      %41 = dma.hbm_to_vmem [thread:$0]  %s34, 128, %s36, [#allocation6], 64, 64, 4
    $region9: #{tpu_custom_call.1} parent=1 // pred_fallthru
      _
    // Predicated region
    $region10: #{tpu_custom_call.1} parent=1 // pred_check
      _
    $region11: #{tpu_custom_call.1} parent=1 // pred_check_branch
      %43 = sbr.rel (0) target = $region13
    $region12: #{tpu_custom_call.1} parent=1 // pred_region
      _
    $region13: #{tpu_custom_call.1} parent=1 // pred_fallthru
      _
    // Predicated region
    $region14: #{tpu_custom_call.1} parent=1 // pred_check
      _
    $region15: #{tpu_custom_call.1} parent=1 // pred_check_branch
      %45 = sbr.rel (0) target = $region17
    $region16: #{tpu_custom_call.1} parent=1 // pred_region
      %47 = vsyncadd [#allocation6], 0
      %s48 = sshll.u32 %s3, 4
      %s49 = int_to_ptr.hbm [resolvable:$true] %s48
      %s50 = sshll.u32 [#allocation7], 4
      %s51 = int_to_ptr.vmem [resolvable:$true] %s50
      %56 = dma.hbm_to_vmem [thread:$0]  %s49, 1024, %s51, [#allocation6], 64, 64, 4
    $region17: #{tpu_custom_call.1} parent=1 // pred_fallthru
      _
    // Predicated region
    $region18: #{tpu_custom_call.1} parent=1 // pred_check
      _
    $region19: #{tpu_custom_call.1} parent=1 // pred_check_branch
      %58 = sbr.rel (0) target = $region21
    $region20: #{tpu_custom_call.1} parent=1 // pred_region
      _
    $region21: #{tpu_custom_call.1} parent=1 // pred_fallthru
      _
    // Predicated region
    $region22: #{tpu_custom_call.1} parent=1 // pred_check
      _
    $region23: #{tpu_custom_call.1} parent=1 // pred_check_branch
      %60 = sbr.rel (0) target = $region25
    $region24: #{tpu_custom_call.1} parent=1 // pred_region
      %62 = vsyncadd [#allocation9], 0
      %s63 = sshll.u32 %s5, 4
      %s64 = int_to_ptr.hbm [resolvable:$true] %s63
      %s65 = sshll.u32 [#allocation8], 4
      %s66 = int_to_ptr.vmem [resolvable:$true] %s65
      %71 = dma.hbm_to_vmem [thread:$0]  %s64, 1024, %s66, [#allocation9], 64, 64, 4
    $region25: #{tpu_custom_call.1} parent=1 // pred_fallthru
      _
    // Predicated region
    $region26: #{tpu_custom_call.1} parent=1 // pred_check
      _
    $region27: #{tpu_custom_call.1} parent=1 // pred_check_branch
      %73 = sbr.rel (0) target = $region29
    $region28: #{tpu_custom_call.1} parent=1 // pred_region
      _
    $region29: #{tpu_custom_call.1} parent=1 // pred_fallthru
      _
    // Predicated region
    $region30: #{tpu_custom_call.1} parent=1 // pred_check
      _
    $region31: #{tpu_custom_call.1} parent=1 // pred_check_branch
      %75 = sbr.rel (0) target = $region33
    $region32: #{tpu_custom_call.1} parent=1 // pred_region
      %77 = dma.done [#allocation3], 128
    $region33: #{tpu_custom_call.1} parent=1 // pred_fallthru
      _
    // Predicated region
    $region34: #{tpu_custom_call.1} parent=1 // pred_check
      _
    $region35: #{tpu_custom_call.1} parent=1 // pred_check_branch
      %79 = sbr.rel (0) target = $region37
    $region36: #{tpu_custom_call.1} parent=1 // pred_region
      %81 = dma.done [#allocation6], 128
    $region37: #{tpu_custom_call.1} parent=1 // pred_fallthru
      _
    // Predicated region
    $region38: #{tpu_custom_call.1} parent=1 // pred_check
      _
    $region39: #{tpu_custom_call.1} parent=1 // pred_check_branch
      %83 = sbr.rel (0) target = $region41
    $region40: #{tpu_custom_call.1} parent=1 // pred_region
      %85 = dma.done [#allocation6], 1024
    $region41: #{tpu_custom_call.1} parent=1 // pred_fallthru
      _
    // Predicated region
    $region42: #{tpu_custom_call.1} parent=1 // pred_check
      _
    $region43: #{tpu_custom_call.1} parent=1 // pred_check_branch
      %87 = sbr.rel (0) target = $region45
    $region44: #{tpu_custom_call.1} parent=1 // pred_region
      %89 = dma.done [#allocation9], 1024
    $region45: #{tpu_custom_call.1} parent=1 // pred_fallthru
      _
    %v91 = vld [vmem:[#allocation2] sm:$0xf]
    %v92 = vld [vmem:[#allocation2 + $0x4] sm:$0xf]
    %v93 = vld [vmem:[#allocation5] sm:$0xf]
    %v94 = vld [vmem:[#allocation5 + $0x4] sm:$0xf]
    %v95 = vld [vmem:[%s2] sm:$0x1]
    %v97 = vperm.slane %v95, 0
    %v101 = vunpack.c.l.b16 %v91
    %v102 = vunpack.c.l.b16 %v92
    %v103 = vpack.c.b16 %v102, %v101
    %v106 = vunpack.c.l.b16 %v93
    %v107 = vunpack.c.l.b16 %v94
    %v108 = vpack.c.b16 %v107, %v106
    %vm110 = vcmask 130048
    %v112 = vsel %vm110, %v103, 0
    %114 = vmatpush.bf16.msra.mxu0 0
    %115 = vmatpush.bf16.msra.mxu0 0
    %116 = vmatpush.bf16.msra.mxu0 0
    %117 = vmatpush.bf16.msra.mxu0 0
    %118 = vmatpush.bf16.msra.mxu0 0
    %119 = vmatpush.bf16.msra.mxu0 0
    %120 = vmatpush.bf16.msra.mxu0 0
    %121 = vmatpush.bf16.msra.mxu0 %v108
    %122 = vmatmul.bf16.gmra.mxu0 %v112
    %v123 = vpop.f32.mrf.mxu0
    %v124 = vadd.f32 %v97, %v123
    %v125 = vpop.f32.mrf.mxu0
    %v126 = vadd.f32 %v97, %v125
    %127 = vdwg.mxu0
    %v128 = vmul.f32 %v124, 0.01
    %v129 = vmul.f32 %v126, 0.01
    %v130 = vmax.f32 %v124, %v128
    %v131 = vmax.f32 %v126, %v129
    %v132 = vpack.c.bf16 %v131, %v130
    %v133 = vld [vmem:[#allocation7] sm:$0xf]
    %v134 = vld [vmem:[#allocation7 + $0x4] sm:$0xf]
    %v135 = vld [vmem:[#allocation7 + $0x8] sm:$0xf]
    %v136 = vld [vmem:[#allocation7 + $0xc] sm:$0xf]
    %v137 = vld [vmem:[#allocation7 + $0x10] sm:$0xf]
    %v138 = vld [vmem:[#allocation7 + $0x14] sm:$0xf]
    %v139 = vld [vmem:[#allocation7 + $0x18] sm:$0xf]
    %v140 = vld [vmem:[#allocation7 + $0x1c] sm:$0xf]
    %v141 = vld [vmem:[#allocation7 + $0x20] sm:$0xf]
    %v142 = vld [vmem:[#allocation7 + $0x24] sm:$0xf]
    %v143 = vld [vmem:[#allocation7 + $0x28] sm:$0xf]
    %v144 = vld [vmem:[#allocation7 + $0x2c] sm:$0xf]
    %v145 = vld [vmem:[#allocation7 + $0x30] sm:$0xf]
    %v146 = vld [vmem:[#allocation7 + $0x34] sm:$0xf]
    %v147 = vld [vmem:[#allocation7 + $0x38] sm:$0xf]
    %v148 = vld [vmem:[#allocation7 + $0x3c] sm:$0xf]
    %v149 = vld [vmem:[%s4] sm:$0x1]
    %v151 = vperm.slane %v149, 0
    %v169 = vunpack.c.l.b16 %v133
    %v170 = vunpack.c.l.b16 %v134
    %v171 = vunpack.c.l.b16 %v135
    %v172 = vunpack.c.l.b16 %v136
    %v173 = vunpack.c.l.b16 %v137
    %v174 = vunpack.c.l.b16 %v138
    %v175 = vunpack.c.l.b16 %v139
    %v176 = vunpack.c.l.b16 %v140
    %v177 = vunpack.c.l.b16 %v141
    %v178 = vunpack.c.l.b16 %v142
    %v179 = vunpack.c.l.b16 %v143
    %v180 = vunpack.c.l.b16 %v144
    %v181 = vunpack.c.l.b16 %v145
    %v182 = vunpack.c.l.b16 %v146
    %v183 = vunpack.c.l.b16 %v147
    %v184 = vunpack.c.l.b16 %v148
    %v185 = vpack.c.b16 %v170, %v169
    %v186 = vpack.c.b16 %v172, %v171
    %v187 = vpack.c.b16 %v174, %v173
    %v188 = vpack.c.b16 %v176, %v175
    %v189 = vpack.c.b16 %v178, %v177
    %v190 = vpack.c.b16 %v180, %v179
    %v191 = vpack.c.b16 %v182, %v181
    %v192 = vpack.c.b16 %v184, %v183
    %201 = vmatpush.bf16.msra.mxu0 %v192
    %202 = vmatpush.bf16.msra.mxu0 %v191
    %203 = vmatpush.bf16.msra.mxu0 %v190
    %204 = vmatpush.bf16.msra.mxu0 %v189
    %205 = vmatpush.bf16.msra.mxu0 %v188
    %206 = vmatpush.bf16.msra.mxu0 %v187
    %207 = vmatpush.bf16.msra.mxu0 %v186
    %208 = vmatpush.bf16.msra.mxu0 %v185
    %209 = vmatmul.bf16.gmra.mxu0 %v132
    %v210 = vpop.f32.mrf.mxu0
    %v211 = vadd.f32 %v151, %v210
    %v212 = vpop.f32.mrf.mxu0
    %v213 = vadd.f32 %v151, %v212
    %214 = vdwg.mxu0
    %v215 = vadd.f32 %v211, %v130
    %v216 = vadd.f32 %v213, %v131
    %v217 = vmul.f32 %v215, 0.01
    %v218 = vmul.f32 %v216, 0.01
    %v219 = vmax.f32 %v215, %v217
    %v220 = vmax.f32 %v216, %v218
    %v221 = vpack.c.bf16 %v220, %v219
    %v222 = vld [vmem:[#allocation8] sm:$0xf]
    %v223 = vld [vmem:[#allocation8 + $0x4] sm:$0xf]
    %v224 = vld [vmem:[#allocation8 + $0x8] sm:$0xf]
    %v225 = vld [vmem:[#allocation8 + $0xc] sm:$0xf]
    %v226 = vld [vmem:[#allocation8 + $0x10] sm:$0xf]
    %v227 = vld [vmem:[#allocation8 + $0x14] sm:$0xf]
    %v228 = vld [vmem:[#allocation8 + $0x18] sm:$0xf]
    %v229 = vld [vmem:[#allocation8 + $0x1c] sm:$0xf]
    %v230 = vld [vmem:[#allocation8 + $0x20] sm:$0xf]
    %v231 = vld [vmem:[#allocation8 + $0x24] sm:$0xf]
    %v232 = vld [vmem:[#allocation8 + $0x28] sm:$0xf]
    %v233 = vld [vmem:[#allocation8 + $0x2c] sm:$0xf]
    %v234 = vld [vmem:[#allocation8 + $0x30] sm:$0xf]
    %v235 = vld [vmem:[#allocation8 + $0x34] sm:$0xf]
    %v236 = vld [vmem:[#allocation8 + $0x38] sm:$0xf]
    %v237 = vld [vmem:[#allocation8 + $0x3c] sm:$0xf]
    %v238 = vld [vmem:[%s6] sm:$0x1]
    %v240 = vperm.slane %v238, 0
    %v258 = vunpack.c.l.b16 %v222
    %v259 = vunpack.c.l.b16 %v223
    %v260 = vunpack.c.l.b16 %v224
    %v261 = vunpack.c.l.b16 %v225
    %v262 = vunpack.c.l.b16 %v226
    %v263 = vunpack.c.l.b16 %v227
    %v264 = vunpack.c.l.b16 %v228
    %v265 = vunpack.c.l.b16 %v229
    %v266 = vunpack.c.l.b16 %v230
    %v267 = vunpack.c.l.b16 %v231
    %v268 = vunpack.c.l.b16 %v232
    %v269 = vunpack.c.l.b16 %v233
    %v270 = vunpack.c.l.b16 %v234
    %v271 = vunpack.c.l.b16 %v235
    %v272 = vunpack.c.l.b16 %v236
    %v273 = vunpack.c.l.b16 %v237
    %v274 = vpack.c.b16 %v259, %v258
    %v275 = vpack.c.b16 %v261, %v260
    %v276 = vpack.c.b16 %v263, %v262
    %v277 = vpack.c.b16 %v265, %v264
    %v278 = vpack.c.b16 %v267, %v266
    %v279 = vpack.c.b16 %v269, %v268
    %v280 = vpack.c.b16 %v271, %v270
    %v281 = vpack.c.b16 %v273, %v272
    %290 = vmatpush.bf16.msra.mxu0 %v281
    %291 = vmatpush.bf16.msra.mxu0 %v280
    %292 = vmatpush.bf16.msra.mxu0 %v279
    %293 = vmatpush.bf16.msra.mxu0 %v278
    %294 = vmatpush.bf16.msra.mxu0 %v277
    %295 = vmatpush.bf16.msra.mxu0 %v276
    %296 = vmatpush.bf16.msra.mxu0 %v275
    %297 = vmatpush.bf16.msra.mxu0 %v274
    %298 = vmatmul.bf16.gmra.mxu0 %v221
    %v299 = vpop.f32.mrf.mxu0
    %v300 = vadd.f32 %v240, %v299
    %v301 = vpop.f32.mrf.mxu0
    %v302 = vadd.f32 %v240, %v301
    %303 = vdwg.mxu0
    %v304 = vadd.f32 %v300, %v219
    %v305 = vadd.f32 %v302, %v220
    %v306 = vmul.f32 %v304, 0.01
    %v307 = vmul.f32 %v305, 0.01
    %v308 = vmax.f32 %v304, %v306
    %v309 = vmax.f32 %v305, %v307
    %310 = vst [vmem:[#allocation10] sm:$0xff] %v308
    %311 = vst [vmem:[#allocation10 + $0x8] sm:$0xff] %v309
    // Predicated region
    $region46: #{tpu_custom_call.1} parent=1 // pred_check
      _
    $region47: #{tpu_custom_call.1} parent=1 // pred_check_branch
      %313 = sbr.rel (0) target = $region49
    $region48: #{tpu_custom_call.1} parent=1 // pred_region
      %315 = vsyncadd [#allocation4], 0
      %s316 = sshll.u32 [#allocation10], 4
      %s317 = int_to_ptr.vmem [resolvable:$true] %s316
      %s318 = sshll.u32 %s7, 4
      %s319 = int_to_ptr.hbm [resolvable:$true] %s318
      %324 = dma.vmem_to_hbm [thread:$0]  %s317, 256, %s319, [#allocation4], 128, 128, 8
    $region49: #{tpu_custom_call.1} parent=1 // pred_fallthru
      _
    // Predicated region
    $region50: #{tpu_custom_call.1} parent=1 // pred_check
      _
    $region51: #{tpu_custom_call.1} parent=1 // pred_check_branch
      %326 = sbr.rel (0) target = $region53
    $region52: #{tpu_custom_call.1} parent=1 // pred_region
      %328 = dma.done [#allocation4], 256
    $region53: #{tpu_custom_call.1} parent=1 // pred_fallthru
      _
    %329 = vsyncpa [#allocation3], 1
    %330 = vsyncpa [#allocation6], 1
    %331 = vsyncpa [#allocation9], 1
    %332 = vsyncpa [#allocation4], 1

// kernel: tpu_custom_call.1
$region0: #{tpu_custom_call.1}
  #allocation0 [shape = 'u32[]', space=smem, size = 0x4, offset = 0x4, fixed_abs, tag = 'smem constant byte address 0x4 - core index']
  #allocation1 [shape = 'u32[72,128]{1,0:T(1,128)}', space=vmem, size = 0x9000, scoped, tag = 'internal scratch']
  %s0 = inlined_call_operand.hbm [shape: bf16[16,16], index: 0, kind: input, shape index: {}]
  %s1 = inlined_call_operand.hbm [shape: bf16[16,128], index: 1, kind: input, shape index: {}]
  %s2 = inlined_call_operand.vmem [shape: f32[1,128], index: 2, kind: input, shape index: {}]
  %s3 = inlined_call_operand.hbm [shape: bf16[128,128], index: 3, kind: input, shape index: {}]
  %s4 = inlined_call_operand.vmem [shape: f32[1,128], index: 4, kind: input, shape index: {}]
  %s5 = inlined_call_operand.hbm [shape: bf16[128,128], index: 5, kind: input, shape index: {}]
  %s6 = inlined_call_operand.vmem [shape: f32[1,128], index: 6, kind: input, shape index: {}]
  %s7 = inlined_call_operand.hbm [shape: f32[16,128], index: 7, kind: output, shape index: {}]
  %s8 = sld [smem:[#allocation0]]
  $region54: #{tpu_custom_call.1} parent=0
    _
  %s10 = ssub.s32 1, %s8
  %s11 = scalar_select 0, %s10, %s8
  $region1: #{tpu_custom_call.1} parent=0
    #allocation2 [shape = 'u8[4096]{0}', space=vmem, size = 0x1000, scoped, tag = 'input window, operand 0, single buffered']
    #allocation3 [shape = 's32[1]{0}', space=sflag, size = 0x4, scoped, tag = 'scoped memory for tpu_custom_call.1']
    #allocation4 [shape = 's32[1]{0}', space=sflag, size = 0x4, scoped, tag = 'scoped memory for tpu_custom_call.1']
    #allocation5 [shape = 'u8[4096]{0}', space=vmem, size = 0x1000, scoped, tag = 'input window, operand 1, single buffered']
    #allocation6 [shape = 's32[1]{0}', space=sflag, size = 0x4, scoped, tag = 'scoped memory for tpu_custom_call.1']
    #allocation7 [shape = 'u8[32768]{0}', space=vmem, size = 0x8000, scoped, tag = 'input window, operand 3, single buffered']
    #allocation8 [shape = 'u8[32768]{0}', space=vmem, size = 0x8000, scoped, tag = 'input window, operand 5, single buffered']
    #allocation9 [shape = 's32[1]{0}', space=sflag, size = 0x4, scoped, tag = 'scoped memory for tpu_custom_call.1']
    #allocation10 [shape = 'u8[8192]{0}', space=vmem, size = 0x2000, scoped, tag = 'output window, operand 0, single buffered']
    %12 = vsyncpa [#allocation3], 0
    %13 = vsyncpa [#allocation6], 0
    %14 = vsyncpa [#allocation9], 0
    %15 = vsyncpa [#allocation4], 0
    // Predicated region
    $region2: #{tpu_custom_call.1} parent=1 // pred_check
      _
    $region3: #{tpu_custom_call.1} parent=1 // pred_check_branch
      %17 = sbr.rel (0) target = $region5
    $region4: #{tpu_custom_call.1} parent=1 // pred_region
      %19 = vsyncadd [#allocation3], 0
      %s20 = sshll.u32 %s0, 4
      %s21 = int_to_ptr.hbm [resolvable:$true] %s20
      %s22 = sshll.u32 [#allocation2], 4
      %s23 = int_to_ptr.vmem [resolvable:$true] %s22
      %28 = dma.hbm_to_vmem [thread:$0]  %s21, 128, %s23, [#allocation3], 64, 64, 4
    $region5: #{tpu_custom_call.1} parent=1 // pred_fallthru
      _
    // Predicated region
    $region6: #{tpu_custom_call.1} parent=1 // pred_check
      _
    $region7: #{tpu_custom_call.1} parent=1 // pred_check_branch
      %30 = sbr.rel (0) target = $region9
    $region8: #{tpu_custom_call.1} parent=1 // pred_region
      %32 = vsyncadd [#allocation6], 0
      %s33 = sshll.u32 %s1, 4
      %s34 = int_to_ptr.hbm [resolvable:$true] %s33
      %s35 = sshll.u32 [#allocation5], 4
      %s36 = int_to_ptr.vmem [resolvable:$true] %s35
      %41 = dma.hbm_to_vmem [thread:$0]  %s34, 128, %s36, [#allocation6], 64, 64, 4
    $region9: #{tpu_custom_call.1} parent=1 // pred_fallthru
      _
    // Predicated region
    $region10: #{tpu_custom_call.1} parent=1 // pred_check
      _
    $region11: #{tpu_custom_call.1} parent=1 // pred_check_branch
      %43 = sbr.rel (0) target = $region13
    $region12: #{tpu_custom_call.1} parent=1 // pred_region
      _
    $region13: #{tpu_custom_call.1} parent=1 // pred_fallthru
      _
    // Predicated region
    $region14: #{tpu_custom_call.1} parent=1 // pred_check
      _
    $region15: #{tpu_custom_call.1} parent=1 // pred_check_branch
      %45 = sbr.rel (0) target = $region17
    $region16: #{tpu_custom_call.1} parent=1 // pred_region
      %47 = vsyncadd [#allocation6], 0
      %s48 = sshll.u32 %s3, 4
      %s49 = int_to_ptr.hbm [resolvable:$true] %s48
      %s50 = sshll.u32 [#allocation7], 4
      %s51 = int_to_ptr.vmem [resolvable:$true] %s50
      %56 = dma.hbm_to_vmem [thread:$0]  %s49, 1024, %s51, [#allocation6], 64, 64, 4
    $region17: #{tpu_custom_call.1} parent=1 // pred_fallthru
      _
    // Predicated region
    $region18: #{tpu_custom_call.1} parent=1 // pred_check
      _
    $region19: #{tpu_custom_call.1} parent=1 // pred_check_branch
      %58 = sbr.rel (0) target = $region21
    $region20: #{tpu_custom_call.1} parent=1 // pred_region
      _
    $region21: #{tpu_custom_call.1} parent=1 // pred_fallthru
      _
    // Predicated region
    $region22: #{tpu_custom_call.1} parent=1 // pred_check
      _
    $region23: #{tpu_custom_call.1} parent=1 // pred_check_branch
      %60 = sbr.rel (0) target = $region25
    $region24: #{tpu_custom_call.1} parent=1 // pred_region
      %62 = vsyncadd [#allocation9], 0
      %s63 = sshll.u32 %s5, 4
      %s64 = int_to_ptr.hbm [resolvable:$true] %s63
      %s65 = sshll.u32 [#allocation8], 4
      %s66 = int_to_ptr.vmem [resolvable:$true] %s65
      %71 = dma.hbm_to_vmem [thread:$0]  %s64, 1024, %s66, [#allocation9], 64, 64, 4
    $region25: #{tpu_custom_call.1} parent=1 // pred_fallthru
      _
    // Predicated region
    $region26: #{tpu_custom_call.1} parent=1 // pred_check
      _
    $region27: #{tpu_custom_call.1} parent=1 // pred_check_branch
      %73 = sbr.rel (0) target = $region29
    $region28: #{tpu_custom_call.1} parent=1 // pred_region
      _
    $region29: #{tpu_custom_call.1} parent=1 // pred_fallthru
      _
    // Predicated region
    $region30: #{tpu_custom_call.1} parent=1 // pred_check
      _
    $region31: #{tpu_custom_call.1} parent=1 // pred_check_branch
      %75 = sbr.rel (0) target = $region33
    $region32: #{tpu_custom_call.1} parent=1 // pred_region
      %77 = dma.done [#allocation3], 128
    $region33: #{tpu_custom_call.1} parent=1 // pred_fallthru
      _
    // Predicated region
    $region34: #{tpu_custom_call.1} parent=1 // pred_check
      _
    $region35: #{tpu_custom_call.1} parent=1 // pred_check_branch
      %79 = sbr.rel (0) target = $region37
    $region36: #{tpu_custom_call.1} parent=1 // pred_region
      %81 = dma.done [#allocation6], 128
    $region37: #{tpu_custom_call.1} parent=1 // pred_fallthru
      _
    // Predicated region
    $region38: #{tpu_custom_call.1} parent=1 // pred_check
      _
    $region39: #{tpu_custom_call.1} parent=1 // pred_check_branch
      %83 = sbr.rel (0) target = $region41
    $region40: #{tpu_custom_call.1} parent=1 // pred_region
      %85 = dma.done [#allocation6], 1024
    $region41: #{tpu_custom_call.1} parent=1 // pred_fallthru
      _
    // Predicated region
    $region42: #{tpu_custom_call.1} parent=1 // pred_check
      _
    $region43: #{tpu_custom_call.1} parent=1 // pred_check_branch
      %87 = sbr.rel (0) target = $region45
    $region44: #{tpu_custom_call.1} parent=1 // pred_region
      %89 = dma.done [#allocation9], 1024
    $region45: #{tpu_custom_call.1} parent=1 // pred_fallthru
      _
    %v91 = vld [vmem:[#allocation2] sm:$0xf]
    %v92 = vld [vmem:[#allocation2 + $0x4] sm:$0xf]
    %v93 = vld [vmem:[#allocation5] sm:$0xf]
    %v94 = vld [vmem:[#allocation5 + $0x4] sm:$0xf]
    %v95 = vld [vmem:[%s2] sm:$0x1]
    %v97 = vperm.slane %v95, 0
    %v101 = vunpack.c.l.b16 %v91
    %v102 = vunpack.c.l.b16 %v92
    %v103 = vpack.c.b16 %v102, %v101
    %v106 = vunpack.c.l.b16 %v93
    %v107 = vunpack.c.l.b16 %v94
    %v108 = vpack.c.b16 %v107, %v106
    %vm110 = vcmask 130048
    %v112 = vsel %vm110, %v103, 0
    %114 = vmatpush.bf16.msra.mxu0 0
    %115 = vmatpush.bf16.msra.mxu0 0
    %116 = vmatpush.bf16.msra.mxu0 0
    %117 = vmatpush.bf16.msra.mxu0 0
    %118 = vmatpush.bf16.msra.mxu0 0
    %119 = vmatpush.bf16.msra.mxu0 0
    %120 = vmatpush.bf16.msra.mxu0 0
    %121 = vmatpush.bf16.msra.mxu0 %v108
    %122 = vmatmul.bf16.gmra.mxu0 %v112
    %v123 = vpop.f32.mrf.mxu0
    %v124 = vadd.f32 %v97, %v123
    %v125 = vpop.f32.mrf.mxu0
    %v126 = vadd.f32 %v97, %v125
    %127 = vdwg.mxu0
    %v128 = vmul.f32 %v124, 0.01
    %v129 = vmul.f32 %v126, 0.01
    %v130 = vmax.f32 %v124, %v128
    %v131 = vmax.f32 %v126, %v129
    %v132 = vpack.c.bf16 %v131, %v130
    %v133 = vld [vmem:[#allocation7] sm:$0xf]
    %v134 = vld [vmem:[#allocation7 + $0x4] sm:$0xf]
    %v135 = vld [vmem:[#allocation7 + $0x8] sm:$0xf]
    %v136 = vld [vmem:[#allocation7 + $0xc] sm:$0xf]
    %v137 = vld [vmem:[#allocation7 + $0x10] sm:$0xf]
    %v138 = vld [vmem:[#allocation7 + $0x14] sm:$0xf]
    %v139 = vld [vmem:[#allocation7 + $0x18] sm:$0xf]
    %v140 = vld [vmem:[#allocation7 + $0x1c] sm:$0xf]
    %v141 = vld [vmem:[#allocation7 + $0x20] sm:$0xf]
    %v142 = vld [vmem:[#allocation7 + $0x24] sm:$0xf]
    %v143 = vld [vmem:[#allocation7 + $0x28] sm:$0xf]
    %v144 = vld [vmem:[#allocation7 + $0x2c] sm:$0xf]
    %v145 = vld [vmem:[#allocation7 + $0x30] sm:$0xf]
    %v146 = vld [vmem:[#allocation7 + $0x34] sm:$0xf]
    %v147 = vld [vmem:[#allocation7 + $0x38] sm:$0xf]
    %v148 = vld [vmem:[#allocation7 + $0x3c] sm:$0xf]
    %v149 = vld [vmem:[%s4] sm:$0x1]
    %v151 = vperm.slane %v149, 0
    %v169 = vunpack.c.l.b16 %v133
    %v170 = vunpack.c.l.b16 %v134
    %v171 = vunpack.c.l.b16 %v135
    %v172 = vunpack.c.l.b16 %v136
    %v173 = vunpack.c.l.b16 %v137
    %v174 = vunpack.c.l.b16 %v138
    %v175 = vunpack.c.l.b16 %v139
    %v176 = vunpack.c.l.b16 %v140
    %v177 = vunpack.c.l.b16 %v141
    %v178 = vunpack.c.l.b16 %v142
    %v179 = vunpack.c.l.b16 %v143
    %v180 = vunpack.c.l.b16 %v144
    %v181 = vunpack.c.l.b16 %v145
    %v182 = vunpack.c.l.b16 %v146
    %v183 = vunpack.c.l.b16 %v147
    %v184 = vunpack.c.l.b16 %v148
    %v185 = vpack.c.b16 %v170, %v169
    %v186 = vpack.c.b16 %v172, %v171
    %v187 = vpack.c.b16 %v174, %v173
    %v188 = vpack.c.b16 %v176, %v175
    %v189 = vpack.c.b16 %v178, %v177
    %v190 = vpack.c.b16 %v180, %v179
    %v191 = vpack.c.b16 %v182, %v181
    %v192 = vpack.c.b16 %v184, %v183
    %201 = vmatpush.bf16.msra.mxu0 %v192
    %202 = vmatpush.bf16.msra.mxu0 %v191
    %203 = vmatpush.bf16.msra.mxu0 %v190
    %204 = vmatpush.bf16.msra.mxu0 %v189
    %205 = vmatpush.bf16.msra.mxu0 %v188
    %206 = vmatpush.bf16.msra.mxu0 %v187
    %207 = vmatpush.bf16.msra.mxu0 %v186
    %208 = vmatpush.bf16.msra.mxu0 %v185
    %209 = vmatmul.bf16.gmra.mxu0 %v132
    %v210 = vpop.f32.mrf.mxu0
    %v211 = vadd.f32 %v151, %v210
    %v212 = vpop.f32.mrf.mxu0
    %v213 = vadd.f32 %v151, %v212
    %214 = vdwg.mxu0
    %v215 = vadd.f32 %v211, %v130
    %v216 = vadd.f32 %v213, %v131
    %v217 = vmul.f32 %v215, 0.01
    %v218 = vmul.f32 %v216, 0.01
    %v219 = vmax.f32 %v215, %v217
    %v220 = vmax.f32 %v216, %v218
    %v221 = vpack.c.bf16 %v220, %v219
    %v222 = vld [vmem:[#allocation8] sm:$0xf]
    %v223 = vld [vmem:[#allocation8 + $0x4] sm:$0xf]
    %v224 = vld [vmem:[#allocation8 + $0x8] sm:$0xf]
    %v225 = vld [vmem:[#allocation8 + $0xc] sm:$0xf]
    %v226 = vld [vmem:[#allocation8 + $0x10] sm:$0xf]
    %v227 = vld [vmem:[#allocation8 + $0x14] sm:$0xf]
    %v228 = vld [vmem:[#allocation8 + $0x18] sm:$0xf]
    %v229 = vld [vmem:[#allocation8 + $0x1c] sm:$0xf]
    %v230 = vld [vmem:[#allocation8 + $0x20] sm:$0xf]
    %v231 = vld [vmem:[#allocation8 + $0x24] sm:$0xf]
    %v232 = vld [vmem:[#allocation8 + $0x28] sm:$0xf]
    %v233 = vld [vmem:[#allocation8 + $0x2c] sm:$0xf]
    %v234 = vld [vmem:[#allocation8 + $0x30] sm:$0xf]
    %v235 = vld [vmem:[#allocation8 + $0x34] sm:$0xf]
    %v236 = vld [vmem:[#allocation8 + $0x38] sm:$0xf]
    %v237 = vld [vmem:[#allocation8 + $0x3c] sm:$0xf]
    %v238 = vld [vmem:[%s6] sm:$0x1]
    %v240 = vperm.slane %v238, 0
    %v258 = vunpack.c.l.b16 %v222
    %v259 = vunpack.c.l.b16 %v223
    %v260 = vunpack.c.l.b16 %v224
    %v261 = vunpack.c.l.b16 %v225
    %v262 = vunpack.c.l.b16 %v226
    %v263 = vunpack.c.l.b16 %v227
    %v264 = vunpack.c.l.b16 %v228
    %v265 = vunpack.c.l.b16 %v229
    %v266 = vunpack.c.l.b16 %v230
    %v267 = vunpack.c.l.b16 %v231
    %v268 = vunpack.c.l.b16 %v232
    %v269 = vunpack.c.l.b16 %v233
    %v270 = vunpack.c.l.b16 %v234
    %v271 = vunpack.c.l.b16 %v235
    %v272 = vunpack.c.l.b16 %v236
    %v273 = vunpack.c.l.b16 %v237
    %v274 = vpack.c.b16 %v259, %v258
    %v275 = vpack.c.b16 %v261, %v260
    %v276 = vpack.c.b16 %v263, %v262
    %v277 = vpack.c.b16 %v265, %v264
    %v278 = vpack.c.b16 %v267, %v266
    %v279 = vpack.c.b16 %v269, %v268
    %v280 = vpack.c.b16 %v271, %v270
    %v281 = vpack.c.b16 %v273, %v272
    %290 = vmatpush.bf16.msra.mxu0 %v281
    %291 = vmatpush.bf16.msra.mxu0 %v280
    %292 = vmatpush.bf16.msra.mxu0 %v279
    %293 = vmatpush.bf16.msra.mxu0 %v278
    %294 = vmatpush.bf16.msra.mxu0 %v277
    %295 = vmatpush.bf16.msra.mxu0 %v276
    %296 = vmatpush.bf16.msra.mxu0 %v275
    %297 = vmatpush.bf16.msra.mxu0 %v274
    %298 = vmatmul.bf16.gmra.mxu0 %v221
    %v299 = vpop.f32.mrf.mxu0
    %v300 = vadd.f32 %v240, %v299
    %v301 = vpop.f32.mrf.mxu0
    %v302 = vadd.f32 %v240, %v301
    %303 = vdwg.mxu0
    %v304 = vadd.f32 %v300, %v219
    %v305 = vadd.f32 %v302, %v220
    %v306 = vmul.f32 %v304, 0.01
    %v307 = vmul.f32 %v305, 0.01
    %v308 = vmax.f32 %v304, %v306
    %v309 = vmax.f32 %v305, %v307
    %310 = vst [vmem:[#allocation10] sm:$0xff] %v308
    %311 = vst [vmem:[#allocation10 + $0x8] sm:$0xff] %v309
    // Predicated region
    $region46: #{tpu_custom_call.1} parent=1 // pred_check
      _
    $region47: #{tpu_custom_call.1} parent=1 // pred_check_branch
      %313 = sbr.rel (0) target = $region49
    $region48: #{tpu_custom_call.1} parent=1 // pred_region
      %315 = vsyncadd [#allocation4], 0
      %s316 = sshll.u32 [#allocation10], 4
      %s317 = int_to_ptr.vmem [resolvable:$true] %s316
      %s318 = sshll.u32 %s7, 4
      %s319 = int_to_ptr.hbm [resolvable:$true] %s318
      %324 = dma.vmem_to_hbm [thread:$0]  %s317, 256, %s319, [#allocation4], 128, 128, 8
    $region49: #{tpu_custom_call.1} parent=1 // pred_fallthru
      _
    // Predicated region
    $region50: #{tpu_custom_call.1} parent=1 // pred_check
      _
    $region51: #{tpu_custom_call.1} parent=1 // pred_check_branch
      %326 = sbr.rel (0) target = $region53
    $region52: #{tpu_custom_call.1} parent=1 // pred_region
      %328 = dma.done [#allocation4], 256
    $region53: #{tpu_custom_call.1} parent=1 // pred_fallthru
      _
    %329 = vsyncpa [#allocation3], 1
    %330 = vsyncpa [#allocation6], 1
    %331 = vsyncpa [#allocation9], 1
    %332 = vsyncpa [#allocation4], 1

</llo_original>
